<compile_context>
chip_gen: v5e
topology: v5e:2x2
jax: 0.10.0
libtpu: 0.0.40
codegen_flags: <defaults>
</compile_context>

<pallas_src>
import functools

import jax
import jax.numpy as jnp
from jax.experimental import pallas as pl
from jax.experimental.pallas import tpu as pltpu


_HALF_LOG_2PI = 0.9189385332046727
_LANES = 128
_SUBLANES = 8
_MAX_TILE_ROWS = 1024            # 1024 x 128 f32 = 512 KiB per live temporary
_VMEM_LIMIT = 32 * 1024 * 1024   # covers v5e's 16 MiB default, fits v7x's 64 MiB


def _cdiv(a, b):
    return -(-a // b)


def _fast_recip(x):
    """1/x: one approx EUP push + one Newton-Raphson step on the idle VPU."""
    r = pl.reciprocal(x, approx=True)
    return r * (2.0 - x * r)


def _digamma_lgamma(x, *, need_lgamma=True):
    """Fused digamma(x) / lgamma(x) for x > 0 (f32), EUP-lean.

    Upward recurrence by 6 folded into pairwise products (2 logs + 2 approx
    reciprocals for the shift) followed by the asymptotic (Stirling) tails,
    which share z = x + 6, log(z) and 1/z.  EUP pushes per element:
    3 logs + 3 approx recips (both), 1 log + 3 recips (digamma only).
    NOTE: the pairwise products overflow f32 once x ~ 3e9; fine for Dirichlet
    concentrations and their row sums in practice.
    """
    d0 = x * (x + 1.0)
    d1 = (x + 2.0) * (x + 3.0)
    d2 = (x + 4.0) * (x + 5.0)
    d01 = d0 * d1

    # sum_{k=0..5} 1/(x+k)   (pairwise rational form)
    recip_shift = (((2.0 * x + 1.0) * d1 + (2.0 * x + 5.0) * d0) * _fast_recip(d01)
                   + (2.0 * x + 9.0) * _fast_recip(d2))

    z = x + 6.0
    log_z = jnp.log(z)
    inv = _fast_recip(z)
    inv2 = inv * inv

    digamma = (log_z - 0.5 * inv
               - inv2 * (1.0 / 12.0
                         - inv2 * (1.0 / 120.0
                                   - inv2 * (1.0 / 252.0)))
               - recip_shift)
    if not need_lgamma:
        return digamma, None

    # sum_{k=0..5} log(x+k); kept split (merged product overflows f32 ~2e6).
    log_shift = jnp.log(d01) + jnp.log(d2)
    lgamma = ((z - 0.5) * log_z - z + _HALF_LOG_2PI
              + inv * (1.0 / 12.0
                       - inv2 * (1.0 / 360.0
                                 - inv2 * (1.0 / 1260.0)))
              - log_shift)
    return digamma, lgamma


def _valid_mask(shape, grid_step, tile_rows, total):
    sub = jax.lax.broadcasted_iota(jnp.int32, shape, 0)
    lane = jax.lax.broadcasted_iota(jnp.int32, shape, 1)
    flat = (grid_step * tile_rows + sub) * _LANES + lane
    return flat < total


def _elem_kernel(a_ref, out_ref, *, total, needs_mask):
    """Flat alphas tile -> lane partials: row 0 = sum lgamma(a),
    row 1 = sum (a-1)*psi(a)."""
    a = a_ref[...].astype(jnp.float32)            # (tile, 128)
    psi, lg = _digamma_lgamma(a)
    apsi = (a - 1.0) * psi
    if needs_mask:
        valid = _valid_mask(a.shape, pl.program_id(0), a.shape[0], total)
        lg = jnp.where(valid, lg, 0.0)
        apsi = jnp.where(valid, apsi, 0.0)
    out_ref[...] = jnp.zeros_like(out_ref)
    out_ref[0:1, 0:1, :] = jnp.sum(lg, axis=0, keepdims=True)[None]
    out_ref[0:1, 1:2, :] = jnp.sum(apsi, axis=0, keepdims=True)[None]


def _row_kernel(a0_ref, sel_ref, out_ref, *, total, num_classes, needs_mask):
    """Per-row (a0, alpha_target) tiles -> lane partials: row 0 = sum psi(a0),
    row 1 = sum lgamma(a0), row 2 = sum (a0-C)*psi(a0), row 3 = sum psi(sel)."""
    a0 = a0_ref[...]                               # (tile, 128) f32
    sel = sel_ref[...]
    psi0, lg0 = _digamma_lgamma(a0)
    psis, _ = _digamma_lgamma(sel, need_lgamma=False)
    wpsi0 = (a0 - float(num_classes)) * psi0
    if needs_mask:
        valid = _valid_mask(a0.shape, pl.program_id(0), a0.shape[0], total)
        psi0 = jnp.where(valid, psi0, 0.0)
        lg0 = jnp.where(valid, lg0, 0.0)
        wpsi0 = jnp.where(valid, wpsi0, 0.0)
        psis = jnp.where(valid, psis, 0.0)
    out_ref[...] = jnp.zeros_like(out_ref)
    out_ref[0:1, 0:1, :] = jnp.sum(psi0, axis=0, keepdims=True)[None]
    out_ref[0:1, 1:2, :] = jnp.sum(lg0, axis=0, keepdims=True)[None]
    out_ref[0:1, 2:3, :] = jnp.sum(wpsi0, axis=0, keepdims=True)[None]
    out_ref[0:1, 3:4, :] = jnp.sum(psis, axis=0, keepdims=True)[None]


def _tile_and_grid(total_elems):
    """Tile rows (multiple of 8, <= 1024) and grid for a flat stream laid out
    as (rows, 128).  A grid > 1 is kept even so v7x's two TensorCores get
    balanced halves of the 'parallel' axis (no-op on v5e/v6e)."""
    rows = _cdiv(total_elems, _LANES)
    rows = _cdiv(rows, _SUBLANES) * _SUBLANES
    if rows <= _MAX_TILE_ROWS:
        return rows, 1
    grid = _cdiv(rows, _MAX_TILE_ROWS)
    if grid % 2:
        grid += 1
    tile = _cdiv(_cdiv(rows, grid), _SUBLANES) * _SUBLANES
    grid = _cdiv(rows, tile)
    return tile, grid


def _lane_pack(x_1d, rows_pad, pad_value):
    total = x_1d.shape[0]
    pad = rows_pad * _LANES - total
    if pad:
        x_1d = jnp.pad(x_1d, (0, pad), constant_values=pad_value)
    return x_1d.reshape(rows_pad, _LANES)


def _compiler_params():
    return pltpu.CompilerParams(
        dimension_semantics=("parallel",),
        vmem_limit_bytes=_VMEM_LIMIT,
    )


def _elementwise_sums(flat_alphas):
    total = flat_alphas.shape[0]
    tile, grid = _tile_and_grid(total)
    rows_pad = tile * grid
    needs_mask = rows_pad * _LANES != total
    # Pad value 1.0 keeps padded psi/lgamma finite; padded rows are masked.
    a2d = _lane_pack(flat_alphas, rows_pad, 1.0)

    partials = pl.pallas_call(
        functools.partial(_elem_kernel, total=total, needs_mask=needs_mask),
        out_shape=jax.ShapeDtypeStruct((grid, _SUBLANES, _LANES), jnp.float32),
        grid_spec=pltpu.PrefetchScalarGridSpec(
            num_scalar_prefetch=0,
            grid=(grid,),
            in_specs=[pl.BlockSpec((tile, _LANES), lambda i: (i, 0))],
            out_specs=pl.BlockSpec((1, _SUBLANES, _LANES), lambda i: (i, 0, 0)),
        ),
        compiler_params=_compiler_params(),
    )(a2d)
    return jnp.sum(partials[:, 0, :]), jnp.sum(partials[:, 1, :])


def _row_sums(a0, sel, *, num_classes):
    total = a0.shape[0]
    tile, grid = _tile_and_grid(total)
    rows_pad = tile * grid
    needs_mask = rows_pad * _LANES != total
    a0_2d = _lane_pack(a0, rows_pad, 1.0)
    sel_2d = _lane_pack(sel, rows_pad, 1.0)

    partials = pl.pallas_call(
        functools.partial(_row_kernel, total=total,
                          num_classes=num_classes, needs_mask=needs_mask),
        out_shape=jax.ShapeDtypeStruct((grid, _SUBLANES, _LANES), jnp.float32),
        grid_spec=pltpu.PrefetchScalarGridSpec(
            num_scalar_prefetch=0,
            grid=(grid,),
            in_specs=[pl.BlockSpec((tile, _LANES), lambda i: (i, 0)),
                      pl.BlockSpec((tile, _LANES), lambda i: (i, 0))],
            out_specs=pl.BlockSpec((1, _SUBLANES, _LANES), lambda i: (i, 0, 0)),
        ),
        compiler_params=_compiler_params(),
    )(a0_2d, sel_2d)
    return (jnp.sum(partials[:, 0, :]), jnp.sum(partials[:, 1, :]),
            jnp.sum(partials[:, 2, :]), jnp.sum(partials[:, 3, :]))


@functools.partial(jax.jit, static_argnames=("regularization_factor",))
def regularized_uce_loss(alphas, targets, *, regularization_factor):
    n, c = alphas.shape
    a_f32 = alphas.astype(jnp.float32)

    # Wrapper-side layout plumbing only (per review): a0 row-sum and the
    # target-class gather are cheap XLA data movement; every psi/lgamma stays
    # inside the Pallas kernels on lane-dense (rows, 128) layouts.
    a0 = jnp.sum(a_f32, axis=1)                                    # (n,)
    sel = jnp.take_along_axis(
        a_f32, targets.astype(jnp.int32)[:, None], axis=1)[:, 0]   # (n,)

    s_lg_all, s_apsi_all = _elementwise_sums(alphas.reshape(-1))
    s_psi0, s_lg0, s_wpsi0, s_psisel = _row_sums(a0, sel, num_classes=c)

    uce_mean = (s_psi0 - s_psisel) / n
    ent_mean = (s_lg_all - s_lg0 + s_wpsi0 - s_apsi_all) / n
    return uce_mean - regularization_factor * ent_mean


# ---------------------------------------------------------------------------
# Pure-JAX reference (same math via jax.scipy.special) for a sanity check.
# ---------------------------------------------------------------------------
def _reference_loss(alphas, targets, regularization_factor):
    from jax.scipy.special import digamma, gammaln
    n, c = alphas.shape
    onehot = jax.nn.one_hot(targets, c, dtype=alphas.dtype)
    a0 = jnp.sum(alphas, axis=1)
    uce = jnp.sum(onehot * (digamma(a0)[:, None] - digamma(alphas)), axis=1)
    ent = (jnp.sum(gammaln(alphas), axis=1) - gammaln(a0)
           + (a0 - c) * digamma(a0)
           - jnp.sum((alphas - 1.0) * digamma(alphas), axis=1))
    return jnp.mean(uce) - regularization_factor * jnp.mean(ent)


if __name__ == "__main__":
    key = jax.random.PRNGKey(0)
    k_a, k_t = jax.random.split(key)

    N, C = 8, 4
    regularization_factor = 0.01  # deterministic module hyperparameter

    # Dirichlet concentrations must be positive.
    alphas = jax.random.uniform(k_a, (N, C), dtype=jnp.float32,
                                minval=0.5, maxval=4.0)
    targets = jax.random.randint(k_t, (N,), 0, C, dtype=jnp.int32)

    loss = regularized_uce_loss(
        alphas, targets, regularization_factor=regularization_factor)
    loss = jax.block_until_ready(loss)

    ref = _reference_loss(alphas, targets, regularization_factor)
    assert jnp.isfinite(loss), "kernel produced non-finite loss"
    assert jnp.allclose(loss, ref, rtol=1e-3, atol=1e-3), (loss, ref)

    print("KERNEL_OK")
</pallas_src>

<mosaic_0001>
module attributes {stable_mosaic.version = 11 : i64} {
  func.func @_row_kernel(%arg0: i32, %arg1: memref<8x128xf32, #tpu.memory_space<vmem>>, %arg2: memref<8x128xf32, #tpu.memory_space<vmem>>, %arg3: memref<1x8x128xf32, #tpu.memory_space<vmem>>) attributes {dimension_semantics = [#tpu.dimension_semantics<parallel>], iteration_bounds = array<i64: 1>, scalar_prefetch = 0 : i64, scratch_operands = 0 : i64, tpu.core_type = #tpu.core_type<tc>, window_params = [{transform_indices = @transform_0, window_bounds = array<i64: 8, 128>}, {transform_indices = @transform_1, window_bounds = array<i64: 8, 128>}, {transform_indices = @transform_2, window_bounds = array<i64: 1, 8, 128>}]} {
    %c0 = arith.constant 0 : index
    %c0_0 = arith.constant 0 : index
    %0 = vector.load %arg1[%c0, %c0_0] : memref<8x128xf32, #tpu.memory_space<vmem>>, vector<8x128xf32>
    %c0_1 = arith.constant 0 : index
    %c0_2 = arith.constant 0 : index
    %1 = vector.load %arg2[%c0_1, %c0_2] : memref<8x128xf32, #tpu.memory_space<vmem>>, vector<8x128xf32>
    %cst = arith.constant 1.000000e+00 : f32
    %2 = vector.broadcast %cst : f32 to vector<8x128xf32>
    %3 = arith.addf %0, %2 : vector<8x128xf32>
    %4 = arith.mulf %0, %3 : vector<8x128xf32>
    %cst_3 = arith.constant 2.000000e+00 : f32
    %5 = vector.broadcast %cst_3 : f32 to vector<8x128xf32>
    %6 = arith.addf %0, %5 : vector<8x128xf32>
    %cst_4 = arith.constant 3.000000e+00 : f32
    %7 = vector.broadcast %cst_4 : f32 to vector<8x128xf32>
    %8 = arith.addf %0, %7 : vector<8x128xf32>
    %9 = arith.mulf %6, %8 : vector<8x128xf32>
    %cst_5 = arith.constant 4.000000e+00 : f32
    %10 = vector.broadcast %cst_5 : f32 to vector<8x128xf32>
    %11 = arith.addf %0, %10 : vector<8x128xf32>
    %cst_6 = arith.constant 5.000000e+00 : f32
    %12 = vector.broadcast %cst_6 : f32 to vector<8x128xf32>
    %13 = arith.addf %0, %12 : vector<8x128xf32>
    %14 = arith.mulf %11, %13 : vector<8x128xf32>
    %15 = arith.mulf %4, %9 : vector<8x128xf32>
    %cst_7 = arith.constant 2.000000e+00 : f32
    %16 = vector.broadcast %cst_7 : f32 to vector<8x128xf32>
    %17 = arith.mulf %16, %0 : vector<8x128xf32>
    %cst_8 = arith.constant 1.000000e+00 : f32
    %18 = vector.broadcast %cst_8 : f32 to vector<8x128xf32>
    %19 = arith.addf %17, %18 : vector<8x128xf32>
    %20 = arith.mulf %19, %9 : vector<8x128xf32>
    %cst_9 = arith.constant 2.000000e+00 : f32
    %21 = vector.broadcast %cst_9 : f32 to vector<8x128xf32>
    %22 = arith.mulf %21, %0 : vector<8x128xf32>
    %cst_10 = arith.constant 5.000000e+00 : f32
    %23 = vector.broadcast %cst_10 : f32 to vector<8x128xf32>
    %24 = arith.addf %22, %23 : vector<8x128xf32>
    %25 = arith.mulf %24, %4 : vector<8x128xf32>
    %26 = arith.addf %20, %25 : vector<8x128xf32>
    %27 = tpu.reciprocal %15 {approx = true} : vector<8x128xf32> -> vector<8x128xf32>
    %28 = arith.mulf %15, %27 : vector<8x128xf32>
    %cst_11 = arith.constant 2.000000e+00 : f32
    %29 = vector.broadcast %cst_11 : f32 to vector<8x128xf32>
    %30 = arith.subf %29, %28 : vector<8x128xf32>
    %31 = arith.mulf %27, %30 : vector<8x128xf32>
    %32 = arith.mulf %26, %31 : vector<8x128xf32>
    %cst_12 = arith.constant 2.000000e+00 : f32
    %33 = vector.broadcast %cst_12 : f32 to vector<8x128xf32>
    %34 = arith.mulf %33, %0 : vector<8x128xf32>
    %cst_13 = arith.constant 9.000000e+00 : f32
    %35 = vector.broadcast %cst_13 : f32 to vector<8x128xf32>
    %36 = arith.addf %34, %35 : vector<8x128xf32>
    %37 = tpu.reciprocal %14 {approx = true} : vector<8x128xf32> -> vector<8x128xf32>
    %38 = arith.mulf %14, %37 : vector<8x128xf32>
    %cst_14 = arith.constant 2.000000e+00 : f32
    %39 = vector.broadcast %cst_14 : f32 to vector<8x128xf32>
    %40 = arith.subf %39, %38 : vector<8x128xf32>
    %41 = arith.mulf %37, %40 : vector<8x128xf32>
    %42 = arith.mulf %36, %41 : vector<8x128xf32>
    %43 = arith.addf %32, %42 : vector<8x128xf32>
    %cst_15 = arith.constant 6.000000e+00 : f32
    %44 = vector.broadcast %cst_15 : f32 to vector<8x128xf32>
    %45 = arith.addf %0, %44 : vector<8x128xf32>
    %46 = math.log %45 : vector<8x128xf32>
    %47 = tpu.reciprocal %45 {approx = true} : vector<8x128xf32> -> vector<8x128xf32>
    %48 = arith.mulf %45, %47 : vector<8x128xf32>
    %cst_16 = arith.constant 2.000000e+00 : f32
    %49 = vector.broadcast %cst_16 : f32 to vector<8x128xf32>
    %50 = arith.subf %49, %48 : vector<8x128xf32>
    %51 = arith.mulf %47, %50 : vector<8x128xf32>
    %52 = arith.mulf %51, %51 : vector<8x128xf32>
    %cst_17 = arith.constant 5.000000e-01 : f32
    %53 = vector.broadcast %cst_17 : f32 to vector<8x128xf32>
    %54 = arith.mulf %53, %51 : vector<8x128xf32>
    %55 = arith.subf %46, %54 : vector<8x128xf32>
    %cst_18 = arith.constant 0.0039682542 : f32
    %56 = vector.broadcast %cst_18 : f32 to vector<8x128xf32>
    %57 = arith.mulf %52, %56 : vector<8x128xf32>
    %cst_19 = arith.constant 0.00833333377 : f32
    %58 = vector.broadcast %cst_19 : f32 to vector<8x128xf32>
    %59 = arith.subf %58, %57 : vector<8x128xf32>
    %60 = arith.mulf %52, %59 : vector<8x128xf32>
    %cst_20 = arith.constant 0.0833333358 : f32
    %61 = vector.broadcast %cst_20 : f32 to vector<8x128xf32>
    %62 = arith.subf %61, %60 : vector<8x128xf32>
    %63 = arith.mulf %52, %62 : vector<8x128xf32>
    %64 = arith.subf %55, %63 : vector<8x128xf32>
    %65 = arith.subf %64, %43 : vector<8x128xf32>
    %66 = math.log %15 : vector<8x128xf32>
    %67 = math.log %14 : vector<8x128xf32>
    %68 = arith.addf %66, %67 : vector<8x128xf32>
    %cst_21 = arith.constant 5.000000e-01 : f32
    %69 = vector.broadcast %cst_21 : f32 to vector<8x128xf32>
    %70 = arith.subf %45, %69 : vector<8x128xf32>
    %71 = arith.mulf %70, %46 : vector<8x128xf32>
    %72 = arith.subf %71, %45 : vector<8x128xf32>
    %cst_22 = arith.constant 0.918938517 : f32
    %73 = vector.broadcast %cst_22 : f32 to vector<8x128xf32>
    %74 = arith.addf %72, %73 : vector<8x128xf32>
    %cst_23 = arith.constant 7.93650805E-4 : f32
    %75 = vector.broadcast %cst_23 : f32 to vector<8x128xf32>
    %76 = arith.mulf %52, %75 : vector<8x128xf32>
    %cst_24 = arith.constant 0.00277777785 : f32
    %77 = vector.broadcast %cst_24 : f32 to vector<8x128xf32>
    %78 = arith.subf %77, %76 : vector<8x128xf32>
    %79 = arith.mulf %52, %78 : vector<8x128xf32>
    %cst_25 = arith.constant 0.0833333358 : f32
    %80 = vector.broadcast %cst_25 : f32 to vector<8x128xf32>
    %81 = arith.subf %80, %79 : vector<8x128xf32>
    %82 = arith.mulf %51, %81 : vector<8x128xf32>
    %83 = arith.addf %74, %82 : vector<8x128xf32>
    %84 = arith.subf %83, %68 : vector<8x128xf32>
    %cst_26 = arith.constant 1.000000e+00 : f32
    %85 = vector.broadcast %cst_26 : f32 to vector<8x128xf32>
    %86 = arith.addf %1, %85 : vector<8x128xf32>
    %87 = arith.mulf %1, %86 : vector<8x128xf32>
    %cst_27 = arith.constant 2.000000e+00 : f32
    %88 = vector.broadcast %cst_27 : f32 to vector<8x128xf32>
    %89 = arith.addf %1, %88 : vector<8x128xf32>
    %cst_28 = arith.constant 3.000000e+00 : f32
    %90 = vector.broadcast %cst_28 : f32 to vector<8x128xf32>
    %91 = arith.addf %1, %90 : vector<8x128xf32>
    %92 = arith.mulf %89, %91 : vector<8x128xf32>
    %cst_29 = arith.constant 4.000000e+00 : f32
    %93 = vector.broadcast %cst_29 : f32 to vector<8x128xf32>
    %94 = arith.addf %1, %93 : vector<8x128xf32>
    %cst_30 = arith.constant 5.000000e+00 : f32
    %95 = vector.broadcast %cst_30 : f32 to vector<8x128xf32>
    %96 = arith.addf %1, %95 : vector<8x128xf32>
    %97 = arith.mulf %94, %96 : vector<8x128xf32>
    %98 = arith.mulf %87, %92 : vector<8x128xf32>
    %cst_31 = arith.constant 2.000000e+00 : f32
    %99 = vector.broadcast %cst_31 : f32 to vector<8x128xf32>
    %100 = arith.mulf %99, %1 : vector<8x128xf32>
    %cst_32 = arith.constant 1.000000e+00 : f32
    %101 = vector.broadcast %cst_32 : f32 to vector<8x128xf32>
    %102 = arith.addf %100, %101 : vector<8x128xf32>
    %103 = arith.mulf %102, %92 : vector<8x128xf32>
    %cst_33 = arith.constant 2.000000e+00 : f32
    %104 = vector.broadcast %cst_33 : f32 to vector<8x128xf32>
    %105 = arith.mulf %104, %1 : vector<8x128xf32>
    %cst_34 = arith.constant 5.000000e+00 : f32
    %106 = vector.broadcast %cst_34 : f32 to vector<8x128xf32>
    %107 = arith.addf %105, %106 : vector<8x128xf32>
    %108 = arith.mulf %107, %87 : vector<8x128xf32>
    %109 = arith.addf %103, %108 : vector<8x128xf32>
    %110 = tpu.reciprocal %98 {approx = true} : vector<8x128xf32> -> vector<8x128xf32>
    %111 = arith.mulf %98, %110 : vector<8x128xf32>
    %cst_35 = arith.constant 2.000000e+00 : f32
    %112 = vector.broadcast %cst_35 : f32 to vector<8x128xf32>
    %113 = arith.subf %112, %111 : vector<8x128xf32>
    %114 = arith.mulf %110, %113 : vector<8x128xf32>
    %115 = arith.mulf %109, %114 : vector<8x128xf32>
    %cst_36 = arith.constant 2.000000e+00 : f32
    %116 = vector.broadcast %cst_36 : f32 to vector<8x128xf32>
    %117 = arith.mulf %116, %1 : vector<8x128xf32>
    %cst_37 = arith.constant 9.000000e+00 : f32
    %118 = vector.broadcast %cst_37 : f32 to vector<8x128xf32>
    %119 = arith.addf %117, %118 : vector<8x128xf32>
    %120 = tpu.reciprocal %97 {approx = true} : vector<8x128xf32> -> vector<8x128xf32>
    %121 = arith.mulf %97, %120 : vector<8x128xf32>
    %cst_38 = arith.constant 2.000000e+00 : f32
    %122 = vector.broadcast %cst_38 : f32 to vector<8x128xf32>
    %123 = arith.subf %122, %121 : vector<8x128xf32>
    %124 = arith.mulf %120, %123 : vector<8x128xf32>
    %125 = arith.mulf %119, %124 : vector<8x128xf32>
    %126 = arith.addf %115, %125 : vector<8x128xf32>
    %cst_39 = arith.constant 6.000000e+00 : f32
    %127 = vector.broadcast %cst_39 : f32 to vector<8x128xf32>
    %128 = arith.addf %1, %127 : vector<8x128xf32>
    %129 = math.log %128 : vector<8x128xf32>
    %130 = tpu.reciprocal %128 {approx = true} : vector<8x128xf32> -> vector<8x128xf32>
    %131 = arith.mulf %128, %130 : vector<8x128xf32>
    %cst_40 = arith.constant 2.000000e+00 : f32
    %132 = vector.broadcast %cst_40 : f32 to vector<8x128xf32>
    %133 = arith.subf %132, %131 : vector<8x128xf32>
    %134 = arith.mulf %130, %133 : vector<8x128xf32>
    %135 = arith.mulf %134, %134 : vector<8x128xf32>
    %cst_41 = arith.constant 5.000000e-01 : f32
    %136 = vector.broadcast %cst_41 : f32 to vector<8x128xf32>
    %137 = arith.mulf %136, %134 : vector<8x128xf32>
    %138 = arith.subf %129, %137 : vector<8x128xf32>
    %cst_42 = arith.constant 0.0039682542 : f32
    %139 = vector.broadcast %cst_42 : f32 to vector<8x128xf32>
    %140 = arith.mulf %135, %139 : vector<8x128xf32>
    %cst_43 = arith.constant 0.00833333377 : f32
    %141 = vector.broadcast %cst_43 : f32 to vector<8x128xf32>
    %142 = arith.subf %141, %140 : vector<8x128xf32>
    %143 = arith.mulf %135, %142 : vector<8x128xf32>
    %cst_44 = arith.constant 0.0833333358 : f32
    %144 = vector.broadcast %cst_44 : f32 to vector<8x128xf32>
    %145 = arith.subf %144, %143 : vector<8x128xf32>
    %146 = arith.mulf %135, %145 : vector<8x128xf32>
    %147 = arith.subf %138, %146 : vector<8x128xf32>
    %148 = arith.subf %147, %126 : vector<8x128xf32>
    %cst_45 = arith.constant 4.000000e+00 : f32
    %149 = vector.broadcast %cst_45 : f32 to vector<8x128xf32>
    %150 = arith.subf %0, %149 : vector<8x128xf32>
    %151 = arith.mulf %150, %65 : vector<8x128xf32>
    %152 = tpu.iota {dimensions = array<i32: 0>} : vector<8x128xi32>
    %153 = tpu.iota {dimensions = array<i32: 1>} : vector<8x128xi32>
    %c8_i32 = arith.constant 8 : i32
    %154 = arith.muli %arg0, %c8_i32 : i32
    %155 = vector.broadcast %154 : i32 to vector<8x128xi32>
    %156 = arith.addi %155, %152 : vector<8x128xi32>
    %c128_i32 = arith.constant 128 : i32
    %157 = vector.broadcast %c128_i32 : i32 to vector<8x128xi32>
    %158 = arith.muli %156, %157 : vector<8x128xi32>
    %159 = arith.addi %158, %153 : vector<8x128xi32>
    %c8_i32_46 = arith.constant 8 : i32
    %160 = vector.broadcast %c8_i32_46 : i32 to vector<8x128xi32>
    %161 = arith.cmpi slt, %159, %160 : vector<8x128xi32>
    %cst_47 = arith.constant 0.000000e+00 : f32
    %162 = vector.broadcast %cst_47 : f32 to vector<8x128xf32>
    %163 = arith.select %161, %65, %162 : vector<8x128xi1>, vector<8x128xf32>
    %cst_48 = arith.constant 0.000000e+00 : f32
    %164 = vector.broadcast %cst_48 : f32 to vector<8x128xf32>
    %165 = arith.select %161, %84, %164 : vector<8x128xi1>, vector<8x128xf32>
    %cst_49 = arith.constant 0.000000e+00 : f32
    %166 = vector.broadcast %cst_49 : f32 to vector<8x128xf32>
    %167 = arith.select %161, %151, %166 : vector<8x128xi1>, vector<8x128xf32>
    %cst_50 = arith.constant 0.000000e+00 : f32
    %168 = vector.broadcast %cst_50 : f32 to vector<8x128xf32>
    %169 = arith.select %161, %148, %168 : vector<8x128xi1>, vector<8x128xf32>
    %cst_51 = arith.constant 0.000000e+00 : f32
    %170 = vector.broadcast %cst_51 : f32 to vector<1x8x128xf32>
    %c0_52 = arith.constant 0 : index
    %c0_53 = arith.constant 0 : index
    %c0_54 = arith.constant 0 : index
    %171 = vector.load %arg3[%c0_52, %c0_53, %c0_54] : memref<1x8x128xf32, #tpu.memory_space<vmem>>, vector<1x8x128xf32>
    tpu.vector_store %arg3[%c0_52, %c0_53, %c0_54], %170 {strides = array<i32>} : memref<1x8x128xf32, #tpu.memory_space<vmem>>, vector<1x8x128xf32>,
    %cst_55 = arith.constant dense<0.000000e+00> : vector<128xf32>
    %172 = vector.multi_reduction <add>, %163, %cst_55 [0] : vector<8x128xf32> to vector<128xf32>
    %173 = vector.shape_cast %172 : vector<128xf32> to vector<1x128xf32>
    %174 = vector.shape_cast %173 : vector<1x128xf32> to vector<1x1x128xf32>
    %c0_56 = arith.constant 0 : index
    %c0_57 = arith.constant 0 : index
    %c0_58 = arith.constant 0 : index
    %175 = vector.load %arg3[%c0_56, %c0_57, %c0_58] : memref<1x8x128xf32, #tpu.memory_space<vmem>>, vector<1x1x128xf32>
    tpu.vector_store %arg3[%c0_56, %c0_57, %c0_58], %174 {strides = array<i32>} : memref<1x8x128xf32, #tpu.memory_space<vmem>>, vector<1x1x128xf32>,
    %cst_59 = arith.constant dense<0.000000e+00> : vector<128xf32>
    %176 = vector.multi_reduction <add>, %165, %cst_59 [0] : vector<8x128xf32> to vector<128xf32>
    %177 = vector.shape_cast %176 : vector<128xf32> to vector<1x128xf32>
    %178 = vector.shape_cast %177 : vector<1x128xf32> to vector<1x1x128xf32>
    %c0_60 = arith.constant 0 : index
    %c1 = arith.constant 1 : index
    %c0_61 = arith.constant 0 : index
    %179 = vector.load %arg3[%c0_60, %c1, %c0_61] : memref<1x8x128xf32, #tpu.memory_space<vmem>>, vector<1x1x128xf32>
    tpu.vector_store %arg3[%c0_60, %c1, %c0_61], %178 {strides = array<i32>} : memref<1x8x128xf32, #tpu.memory_space<vmem>>, vector<1x1x128xf32>,
    %cst_62 = arith.constant dense<0.000000e+00> : vector<128xf32>
    %180 = vector.multi_reduction <add>, %167, %cst_62 [0] : vector<8x128xf32> to vector<128xf32>
    %181 = vector.shape_cast %180 : vector<128xf32> to vector<1x128xf32>
    %182 = vector.shape_cast %181 : vector<1x128xf32> to vector<1x1x128xf32>
    %c0_63 = arith.constant 0 : index
    %c2 = arith.constant 2 : index
    %c0_64 = arith.constant 0 : index
    %183 = vector.load %arg3[%c0_63, %c2, %c0_64] : memref<1x8x128xf32, #tpu.memory_space<vmem>>, vector<1x1x128xf32>
    tpu.vector_store %arg3[%c0_63, %c2, %c0_64], %182 {strides = array<i32>} : memref<1x8x128xf32, #tpu.memory_space<vmem>>, vector<1x1x128xf32>,
    %cst_65 = arith.constant dense<0.000000e+00> : vector<128xf32>
    %184 = vector.multi_reduction <add>, %169, %cst_65 [0] : vector<8x128xf32> to vector<128xf32>
    %185 = vector.shape_cast %184 : vector<128xf32> to vector<1x128xf32>
    %186 = vector.shape_cast %185 : vector<1x128xf32> to vector<1x1x128xf32>
    %c0_66 = arith.constant 0 : index
    %c3 = arith.constant 3 : index
    %c0_67 = arith.constant 0 : index
    %187 = vector.load %arg3[%c0_66, %c3, %c0_67] : memref<1x8x128xf32, #tpu.memory_space<vmem>>, vector<1x1x128xf32>
    tpu.vector_store %arg3[%c0_66, %c3, %c0_67], %186 {strides = array<i32>} : memref<1x8x128xf32, #tpu.memory_space<vmem>>, vector<1x1x128xf32>,
    return
  }
  func.func @transform_0(%arg0: i32) -> (i32, i32) {
    %c0_i32 = arith.constant 0 : i32
    %c0_i32_0 = arith.constant 0 : i32
    return %arg0, %c0_i32 : i32, i32
  }
  func.func @transform_1(%arg0: i32) -> (i32, i32) {
    %c0_i32 = arith.constant 0 : i32
    %c0_i32_0 = arith.constant 0 : i32
    return %arg0, %c0_i32 : i32, i32
  }
  func.func @transform_2(%arg0: i32) -> (i32, i32, i32) {
    %c0_i32 = arith.constant 0 : i32
    %c0_i32_0 = arith.constant 0 : i32
    %c0_i32_1 = arith.constant 0 : i32
    return %arg0, %c0_i32, %c0_i32_0 : i32, i32, i32
  }
}

module attributes {stable_mosaic.version = 11 : i64} {
  func.func @_elem_kernel(%arg0: i32, %arg1: memref<8x128xf32, #tpu.memory_space<vmem>>, %arg2: memref<1x8x128xf32, #tpu.memory_space<vmem>>) attributes {dimension_semantics = [#tpu.dimension_semantics<parallel>], iteration_bounds = array<i64: 1>, scalar_prefetch = 0 : i64, scratch_operands = 0 : i64, tpu.core_type = #tpu.core_type<tc>, window_params = [{transform_indices = @transform_0, window_bounds = array<i64: 8, 128>}, {transform_indices = @transform_1, window_bounds = array<i64: 1, 8, 128>}]} {
    %c0 = arith.constant 0 : index
    %c0_0 = arith.constant 0 : index
    %0 = vector.load %arg1[%c0, %c0_0] : memref<8x128xf32, #tpu.memory_space<vmem>>, vector<8x128xf32>
    %cst = arith.constant 1.000000e+00 : f32
    %1 = vector.broadcast %cst : f32 to vector<8x128xf32>
    %2 = arith.addf %0, %1 : vector<8x128xf32>
    %3 = arith.mulf %0, %2 : vector<8x128xf32>
    %cst_1 = arith.constant 2.000000e+00 : f32
    %4 = vector.broadcast %cst_1 : f32 to vector<8x128xf32>
    %5 = arith.addf %0, %4 : vector<8x128xf32>
    %cst_2 = arith.constant 3.000000e+00 : f32
    %6 = vector.broadcast %cst_2 : f32 to vector<8x128xf32>
    %7 = arith.addf %0, %6 : vector<8x128xf32>
    %8 = arith.mulf %5, %7 : vector<8x128xf32>
    %cst_3 = arith.constant 4.000000e+00 : f32
    %9 = vector.broadcast %cst_3 : f32 to vector<8x128xf32>
    %10 = arith.addf %0, %9 : vector<8x128xf32>
    %cst_4 = arith.constant 5.000000e+00 : f32
    %11 = vector.broadcast %cst_4 : f32 to vector<8x128xf32>
    %12 = arith.addf %0, %11 : vector<8x128xf32>
    %13 = arith.mulf %10, %12 : vector<8x128xf32>
    %14 = arith.mulf %3, %8 : vector<8x128xf32>
    %cst_5 = arith.constant 2.000000e+00 : f32
    %15 = vector.broadcast %cst_5 : f32 to vector<8x128xf32>
    %16 = arith.mulf %15, %0 : vector<8x128xf32>
    %cst_6 = arith.constant 1.000000e+00 : f32
    %17 = vector.broadcast %cst_6 : f32 to vector<8x128xf32>
    %18 = arith.addf %16, %17 : vector<8x128xf32>
    %19 = arith.mulf %18, %8 : vector<8x128xf32>
    %cst_7 = arith.constant 2.000000e+00 : f32
    %20 = vector.broadcast %cst_7 : f32 to vector<8x128xf32>
    %21 = arith.mulf %20, %0 : vector<8x128xf32>
    %cst_8 = arith.constant 5.000000e+00 : f32
    %22 = vector.broadcast %cst_8 : f32 to vector<8x128xf32>
    %23 = arith.addf %21, %22 : vector<8x128xf32>
    %24 = arith.mulf %23, %3 : vector<8x128xf32>
    %25 = arith.addf %19, %24 : vector<8x128xf32>
    %26 = tpu.reciprocal %14 {approx = true} : vector<8x128xf32> -> vector<8x128xf32>
    %27 = arith.mulf %14, %26 : vector<8x128xf32>
    %cst_9 = arith.constant 2.000000e+00 : f32
    %28 = vector.broadcast %cst_9 : f32 to vector<8x128xf32>
    %29 = arith.subf %28, %27 : vector<8x128xf32>
    %30 = arith.mulf %26, %29 : vector<8x128xf32>
    %31 = arith.mulf %25, %30 : vector<8x128xf32>
    %cst_10 = arith.constant 2.000000e+00 : f32
    %32 = vector.broadcast %cst_10 : f32 to vector<8x128xf32>
    %33 = arith.mulf %32, %0 : vector<8x128xf32>
    %cst_11 = arith.constant 9.000000e+00 : f32
    %34 = vector.broadcast %cst_11 : f32 to vector<8x128xf32>
    %35 = arith.addf %33, %34 : vector<8x128xf32>
    %36 = tpu.reciprocal %13 {approx = true} : vector<8x128xf32> -> vector<8x128xf32>
    %37 = arith.mulf %13, %36 : vector<8x128xf32>
    %cst_12 = arith.constant 2.000000e+00 : f32
    %38 = vector.broadcast %cst_12 : f32 to vector<8x128xf32>
    %39 = arith.subf %38, %37 : vector<8x128xf32>
    %40 = arith.mulf %36, %39 : vector<8x128xf32>
    %41 = arith.mulf %35, %40 : vector<8x128xf32>
    %42 = arith.addf %31, %41 : vector<8x128xf32>
    %cst_13 = arith.constant 6.000000e+00 : f32
    %43 = vector.broadcast %cst_13 : f32 to vector<8x128xf32>
    %44 = arith.addf %0, %43 : vector<8x128xf32>
    %45 = math.log %44 : vector<8x128xf32>
    %46 = tpu.reciprocal %44 {approx = true} : vector<8x128xf32> -> vector<8x128xf32>
    %47 = arith.mulf %44, %46 : vector<8x128xf32>
    %cst_14 = arith.constant 2.000000e+00 : f32
    %48 = vector.broadcast %cst_14 : f32 to vector<8x128xf32>
    %49 = arith.subf %48, %47 : vector<8x128xf32>
    %50 = arith.mulf %46, %49 : vector<8x128xf32>
    %51 = arith.mulf %50, %50 : vector<8x128xf32>
    %cst_15 = arith.constant 5.000000e-01 : f32
    %52 = vector.broadcast %cst_15 : f32 to vector<8x128xf32>
    %53 = arith.mulf %52, %50 : vector<8x128xf32>
    %54 = arith.subf %45, %53 : vector<8x128xf32>
    %cst_16 = arith.constant 0.0039682542 : f32
    %55 = vector.broadcast %cst_16 : f32 to vector<8x128xf32>
    %56 = arith.mulf %51, %55 : vector<8x128xf32>
    %cst_17 = arith.constant 0.00833333377 : f32
    %57 = vector.broadcast %cst_17 : f32 to vector<8x128xf32>
    %58 = arith.subf %57, %56 : vector<8x128xf32>
    %59 = arith.mulf %51, %58 : vector<8x128xf32>
    %cst_18 = arith.constant 0.0833333358 : f32
    %60 = vector.broadcast %cst_18 : f32 to vector<8x128xf32>
    %61 = arith.subf %60, %59 : vector<8x128xf32>
    %62 = arith.mulf %51, %61 : vector<8x128xf32>
    %63 = arith.subf %54, %62 : vector<8x128xf32>
    %64 = arith.subf %63, %42 : vector<8x128xf32>
    %65 = math.log %14 : vector<8x128xf32>
    %66 = math.log %13 : vector<8x128xf32>
    %67 = arith.addf %65, %66 : vector<8x128xf32>
    %cst_19 = arith.constant 5.000000e-01 : f32
    %68 = vector.broadcast %cst_19 : f32 to vector<8x128xf32>
    %69 = arith.subf %44, %68 : vector<8x128xf32>
    %70 = arith.mulf %69, %45 : vector<8x128xf32>
    %71 = arith.subf %70, %44 : vector<8x128xf32>
    %cst_20 = arith.constant 0.918938517 : f32
    %72 = vector.broadcast %cst_20 : f32 to vector<8x128xf32>
    %73 = arith.addf %71, %72 : vector<8x128xf32>
    %cst_21 = arith.constant 7.93650805E-4 : f32
    %74 = vector.broadcast %cst_21 : f32 to vector<8x128xf32>
    %75 = arith.mulf %51, %74 : vector<8x128xf32>
    %cst_22 = arith.constant 0.00277777785 : f32
    %76 = vector.broadcast %cst_22 : f32 to vector<8x128xf32>
    %77 = arith.subf %76, %75 : vector<8x128xf32>
    %78 = arith.mulf %51, %77 : vector<8x128xf32>
    %cst_23 = arith.constant 0.0833333358 : f32
    %79 = vector.broadcast %cst_23 : f32 to vector<8x128xf32>
    %80 = arith.subf %79, %78 : vector<8x128xf32>
    %81 = arith.mulf %50, %80 : vector<8x128xf32>
    %82 = arith.addf %73, %81 : vector<8x128xf32>
    %83 = arith.subf %82, %67 : vector<8x128xf32>
    %cst_24 = arith.constant 1.000000e+00 : f32
    %84 = vector.broadcast %cst_24 : f32 to vector<8x128xf32>
    %85 = arith.subf %0, %84 : vector<8x128xf32>
    %86 = arith.mulf %85, %64 : vector<8x128xf32>
    %87 = tpu.iota {dimensions = array<i32: 0>} : vector<8x128xi32>
    %88 = tpu.iota {dimensions = array<i32: 1>} : vector<8x128xi32>
    %c8_i32 = arith.constant 8 : i32
    %89 = arith.muli %arg0, %c8_i32 : i32
    %90 = vector.broadcast %89 : i32 to vector<8x128xi32>
    %91 = arith.addi %90, %87 : vector<8x128xi32>
    %c128_i32 = arith.constant 128 : i32
    %92 = vector.broadcast %c128_i32 : i32 to vector<8x128xi32>
    %93 = arith.muli %91, %92 : vector<8x128xi32>
    %94 = arith.addi %93, %88 : vector<8x128xi32>
    %c32_i32 = arith.constant 32 : i32
    %95 = vector.broadcast %c32_i32 : i32 to vector<8x128xi32>
    %96 = arith.cmpi slt, %94, %95 : vector<8x128xi32>
    %cst_25 = arith.constant 0.000000e+00 : f32
    %97 = vector.broadcast %cst_25 : f32 to vector<8x128xf32>
    %98 = arith.select %96, %83, %97 : vector<8x128xi1>, vector<8x128xf32>
    %cst_26 = arith.constant 0.000000e+00 : f32
    %99 = vector.broadcast %cst_26 : f32 to vector<8x128xf32>
    %100 = arith.select %96, %86, %99 : vector<8x128xi1>, vector<8x128xf32>
    %cst_27 = arith.constant 0.000000e+00 : f32
    %101 = vector.broadcast %cst_27 : f32 to vector<1x8x128xf32>
    %c0_28 = arith.constant 0 : index
    %c0_29 = arith.constant 0 : index
    %c0_30 = arith.constant 0 : index
    %102 = vector.load %arg2[%c0_28, %c0_29, %c0_30] : memref<1x8x128xf32, #tpu.memory_space<vmem>>, vector<1x8x128xf32>
    tpu.vector_store %arg2[%c0_28, %c0_29, %c0_30], %101 {strides = array<i32>} : memref<1x8x128xf32, #tpu.memory_space<vmem>>, vector<1x8x128xf32>,
    %cst_31 = arith.constant dense<0.000000e+00> : vector<128xf32>
    %103 = vector.multi_reduction <add>, %98, %cst_31 [0] : vector<8x128xf32> to vector<128xf32>
    %104 = vector.shape_cast %103 : vector<128xf32> to vector<1x128xf32>
    %105 = vector.shape_cast %104 : vector<1x128xf32> to vector<1x1x128xf32>
    %c0_32 = arith.constant 0 : index
    %c0_33 = arith.constant 0 : index
    %c0_34 = arith.constant 0 : index
    %106 = vector.load %arg2[%c0_32, %c0_33, %c0_34] : memref<1x8x128xf32, #tpu.memory_space<vmem>>, vector<1x1x128xf32>
    tpu.vector_store %arg2[%c0_32, %c0_33, %c0_34], %105 {strides = array<i32>} : memref<1x8x128xf32, #tpu.memory_space<vmem>>, vector<1x1x128xf32>,
    %cst_35 = arith.constant dense<0.000000e+00> : vector<128xf32>
    %107 = vector.multi_reduction <add>, %100, %cst_35 [0] : vector<8x128xf32> to vector<128xf32>
    %108 = vector.shape_cast %107 : vector<128xf32> to vector<1x128xf32>
    %109 = vector.shape_cast %108 : vector<1x128xf32> to vector<1x1x128xf32>
    %c0_36 = arith.constant 0 : index
    %c1 = arith.constant 1 : index
    %c0_37 = arith.constant 0 : index
    %110 = vector.load %arg2[%c0_36, %c1, %c0_37] : memref<1x8x128xf32, #tpu.memory_space<vmem>>, vector<1x1x128xf32>
    tpu.vector_store %arg2[%c0_36, %c1, %c0_37], %109 {strides = array<i32>} : memref<1x8x128xf32, #tpu.memory_space<vmem>>, vector<1x1x128xf32>,
    return
  }
  func.func @transform_0(%arg0: i32) -> (i32, i32) {
    %c0_i32 = arith.constant 0 : i32
    %c0_i32_0 = arith.constant 0 : i32
    return %arg0, %c0_i32 : i32, i32
  }
  func.func @transform_1(%arg0: i32) -> (i32, i32, i32) {
    %c0_i32 = arith.constant 0 : i32
    %c0_i32_0 = arith.constant 0 : i32
    %c0_i32_1 = arith.constant 0 : i32
    return %arg0, %c0_i32, %c0_i32_0 : i32, i32, i32
  }
}

</mosaic_0001>

<llo_original>
// kernel: regularized_uce_loss.3
$region0: #{regularized_uce_loss.3}
  #allocation0 [shape = 'u32[]', space=smem, size = 0x4, offset = 0x4, fixed_abs, tag = 'smem constant byte address 0x4 - core index']
  #allocation1 [shape = 'u32[72,128]{1,0:T(1,128)}', space=vmem, size = 0x9000, scoped, tag = 'internal scratch']
  %s0 = inlined_call_operand.vmem [shape: f32[8,128], index: 0, kind: input, shape index: {}]
  %s1 = inlined_call_operand.vmem [shape: f32[8,128], index: 1, kind: input, shape index: {}]
  %s2 = inlined_call_operand.vmem [shape: f32[1,8,128], index: 2, kind: output, shape index: {}]
  %s3 = sld [smem:[#allocation0]]
  $region18: #{regularized_uce_loss.3} parent=0
    _
  %s5 = ssub.s32 1, %s3
  %s6 = scalar_select 0, %s5, %s3
  // Predicated region
  $region2: #{regularized_uce_loss.3} parent=0 // pred_check
    _
  $region3: #{regularized_uce_loss.3} parent=0 // pred_check_branch
    %8 = sbr.rel (0) target = $region5
  $region4: #{regularized_uce_loss.3} parent=0 // pred_region
    _
  $region5: #{regularized_uce_loss.3} parent=0 // pred_fallthru
    _
  // Predicated region
  $region6: #{regularized_uce_loss.3} parent=0 // pred_check
    _
  $region7: #{regularized_uce_loss.3} parent=0 // pred_check_branch
    %10 = sbr.rel (0) target = $region9
  $region8: #{regularized_uce_loss.3} parent=0 // pred_region
    _
  $region9: #{regularized_uce_loss.3} parent=0 // pred_fallthru
    _
  %v11 = vld [vmem:[%s0] sm:$0xff]
  %v12 = vld [vmem:[%s1] sm:$0xff]
  %v13 = vadd.f32 %v11, 1.0
  %v14 = vmul.f32 %v11, %v13
  %v15 = vadd.f32 %v11, 2.0
  %v16 = vadd.f32 %v11, 3.0
  %v17 = vmul.f32 %v15, %v16
  %v18 = vadd.f32 %v11, 4.0
  %v19 = vadd.f32 %v11, 5.0
  %v20 = vmul.f32 %v18, %v19
  %v21 = vmul.f32 %v14, %v17
  %v22 = vmul.f32 %v11, 2.0
  %v23 = vadd.f32 %v22, 1.0
  %v24 = vmul.f32 %v23, %v17
  %v25 = vadd.f32 %v22, 5.0
  %v26 = vmul.f32 %v25, %v14
  %v27 = vadd.f32 %v24, %v26
  %v28 = vrcp.pop %v21
  %v29 = vmul.f32 %v21, %v28
  %v30 = vsub.f32 2.0, %v29
  %v31 = vmul.f32 %v28, %v30
  %v32 = vmul.f32 %v27, %v31
  %v33 = vadd.f32 %v22, 9.0
  %v34 = vrcp.pop %v20
  %v35 = vmul.f32 %v20, %v34
  %v36 = vsub.f32 2.0, %v35
  %v37 = vmul.f32 %v34, %v36
  %v38 = vmul.f32 %v33, %v37
  %v39 = vadd.f32 %v32, %v38
  %v40 = vadd.f32 %v11, 6.0
  %v41 = vlog2.pop %v40
  %v42 = vmul.f32 %v41, 0.6931472
  %v43 = vrcp.pop %v40
  %v44 = vmul.f32 %v40, %v43
  %v45 = vsub.f32 2.0, %v44
  %v46 = vmul.f32 %v43, %v45
  %v47 = vmul.f32 %v46, %v46
  %v48 = vmul.f32 %v46, 0.5
  %v49 = vsub.f32 %v42, %v48
  %v50 = vmul.f32 %v47, 0.003968254
  %v51 = vsub.f32 0.008333334, %v50
  %v52 = vmul.f32 %v47, %v51
  %v53 = vsub.f32 0.083333336, %v52
  %v54 = vmul.f32 %v47, %v53
  %v55 = vsub.f32 %v49, %v54
  %v56 = vsub.f32 %v55, %v39
  %v57 = vlog2.pop %v21
  %v58 = vmul.f32 %v57, 0.6931472
  %v59 = vlog2.pop %v20
  %v60 = vmul.f32 %v59, 0.6931472
  %v61 = vadd.f32 %v58, %v60
  %v62 = vsub.f32 %v40, 0.5
  %v63 = vmul.f32 %v62, %v42
  %v64 = vsub.f32 %v63, %v40
  %v65 = vadd.f32 %v64, 0.9189385
  %v66 = vmul.f32 %v47, 0.0007936508
  %v67 = vsub.f32 0.0027777778, %v66
  %v68 = vmul.f32 %v47, %v67
  %v69 = vsub.f32 0.083333336, %v68
  %v70 = vmul.f32 %v46, %v69
  %v71 = vadd.f32 %v65, %v70
  %v72 = vsub.f32 %v71, %v61
  %v73 = vadd.f32 %v12, 1.0
  %v74 = vmul.f32 %v12, %v73
  %v75 = vadd.f32 %v12, 2.0
  %v76 = vadd.f32 %v12, 3.0
  %v77 = vmul.f32 %v75, %v76
  %v78 = vadd.f32 %v12, 4.0
  %v79 = vadd.f32 %v12, 5.0
  %v80 = vmul.f32 %v78, %v79
  %v81 = vmul.f32 %v74, %v77
  %v82 = vmul.f32 %v12, 2.0
  %v83 = vadd.f32 %v82, 1.0
  %v84 = vmul.f32 %v83, %v77
  %v85 = vadd.f32 %v82, 5.0
  %v86 = vmul.f32 %v85, %v74
  %v87 = vadd.f32 %v84, %v86
  %v88 = vrcp.pop %v81
  %v89 = vmul.f32 %v81, %v88
  %v90 = vsub.f32 2.0, %v89
  %v91 = vmul.f32 %v88, %v90
  %v92 = vmul.f32 %v87, %v91
  %v93 = vadd.f32 %v82, 9.0
  %v94 = vrcp.pop %v80
  %v95 = vmul.f32 %v80, %v94
  %v96 = vsub.f32 2.0, %v95
  %v97 = vmul.f32 %v94, %v96
  %v98 = vmul.f32 %v93, %v97
  %v99 = vadd.f32 %v92, %v98
  %v100 = vadd.f32 %v12, 6.0
  %v101 = vlog2.pop %v100
  %v102 = vmul.f32 %v101, 0.6931472
  %v103 = vrcp.pop %v100
  %v104 = vmul.f32 %v100, %v103
  %v105 = vsub.f32 2.0, %v104
  %v106 = vmul.f32 %v103, %v105
  %v107 = vmul.f32 %v106, %v106
  %v108 = vmul.f32 %v106, 0.5
  %v109 = vsub.f32 %v102, %v108
  %v110 = vmul.f32 %v107, 0.003968254
  %v111 = vsub.f32 0.008333334, %v110
  %v112 = vmul.f32 %v107, %v111
  %v113 = vsub.f32 0.083333336, %v112
  %v114 = vmul.f32 %v107, %v113
  %v115 = vsub.f32 %v109, %v114
  %v116 = vsub.f32 %v115, %v99
  %v117 = vsub.f32 %v11, 4.0
  %v118 = vmul.f32 %v117, %v56
  %v119 = vlaneseq
  %v120 = vshrl.u32 %v119, 7
  %v121 = vlaneseq
  %v122 = vand.u32 %v121, 127
  %s123 = smul.u32 0, 8
  %v124 = vstv %s123
  %v125 = vadd.s32 %v124, %v120
  %v126 = vmul.u32 %v125, 128
  %v127 = vadd.s32 %v126, %v122
  %vm128 = vcmp.lt.s32.totalorder %v127, 8
  %v129 = vsel %vm128, %v56, 0.0
  %v130 = vsel %vm128, %v72, 0.0
  %v131 = vsel %vm128, %v118, 0.0
  %v132 = vsel %vm128, %v116, 0.0
  %133 = vst [vmem:[%s2] sm:$0xff] 0.0
  %v134 = vrot.slane %v129, 4
  %v135 = vadd.f32 %v129, %v134
  %v136 = vrot.slane %v135, 2
  %v137 = vadd.f32 %v135, %v136
  %v138 = vrot.slane %v137, 1
  %v139 = vadd.f32 %v137, %v138
  %140 = vst [vmem:[%s2] sm:$0x1] %v139
  %v141 = vrot.slane %v130, 4
  %v142 = vadd.f32 %v130, %v141
  %v143 = vrot.slane %v142, 2
  %v144 = vadd.f32 %v142, %v143
  %v145 = vrot.slane %v144, 1
  %v146 = vadd.f32 %v144, %v145
  %147 = vst [vmem:[%s2 + $0x1] sm:$0x1] %v146
  %v148 = vrot.slane %v131, 4
  %v149 = vadd.f32 %v131, %v148
  %v150 = vrot.slane %v149, 2
  %v151 = vadd.f32 %v149, %v150
  %v152 = vrot.slane %v151, 1
  %v153 = vadd.f32 %v151, %v152
  %154 = vst [vmem:[%s2 + $0x2] sm:$0x1] %v153
  %v155 = vrot.slane %v132, 4
  %v156 = vadd.f32 %v132, %v155
  %v157 = vrot.slane %v156, 2
  %v158 = vadd.f32 %v156, %v157
  %v159 = vrot.slane %v158, 1
  %v160 = vadd.f32 %v158, %v159
  %161 = vst [vmem:[%s2 + $0x3] sm:$0x1] %v160
  // Predicated region
  $region10: #{regularized_uce_loss.3} parent=0 // pred_check
    _
  $region11: #{regularized_uce_loss.3} parent=0 // pred_check_branch
    %163 = sbr.rel (0) target = $region13
  $region12: #{regularized_uce_loss.3} parent=0 // pred_region
    _
  $region13: #{regularized_uce_loss.3} parent=0 // pred_fallthru
    _
  // Predicated region
  $region14: #{regularized_uce_loss.3} parent=0 // pred_check
    _
  $region15: #{regularized_uce_loss.3} parent=0 // pred_check_branch
    %165 = sbr.rel (0) target = $region17
  $region16: #{regularized_uce_loss.3} parent=0 // pred_region
    _
  $region17: #{regularized_uce_loss.3} parent=0 // pred_fallthru
    _

// kernel: regularized_uce_loss.2
$region0: #{regularized_uce_loss.2}
  #allocation0 [shape = 'u32[]', space=smem, size = 0x4, offset = 0x4, fixed_abs, tag = 'smem constant byte address 0x4 - core index']
  #allocation1 [shape = 'u32[72,128]{1,0:T(1,128)}', space=vmem, size = 0x9000, scoped, tag = 'internal scratch']
  %s0 = inlined_call_operand.vmem [shape: f32[8,128], index: 0, kind: input, shape index: {}]
  %s1 = inlined_call_operand.vmem [shape: f32[1,8,128], index: 1, kind: output, shape index: {}]
  %s2 = sld [smem:[#allocation0]]
  $region14: #{regularized_uce_loss.2} parent=0
    _
  %s4 = ssub.s32 1, %s2
  %s5 = scalar_select 0, %s4, %s2
  // Predicated region
  $region2: #{regularized_uce_loss.2} parent=0 // pred_check
    _
  $region3: #{regularized_uce_loss.2} parent=0 // pred_check_branch
    %7 = sbr.rel (0) target = $region5
  $region4: #{regularized_uce_loss.2} parent=0 // pred_region
    _
  $region5: #{regularized_uce_loss.2} parent=0 // pred_fallthru
    _
  %v8 = vld [vmem:[%s0] sm:$0xff]
  %v9 = vadd.f32 %v8, 1.0
  %v10 = vmul.f32 %v8, %v9
  %v11 = vadd.f32 %v8, 2.0
  %v12 = vadd.f32 %v8, 3.0
  %v13 = vmul.f32 %v11, %v12
  %v14 = vadd.f32 %v8, 4.0
  %v15 = vadd.f32 %v8, 5.0
  %v16 = vmul.f32 %v14, %v15
  %v17 = vmul.f32 %v10, %v13
  %v18 = vmul.f32 %v8, 2.0
  %v19 = vadd.f32 %v18, 1.0
  %v20 = vmul.f32 %v19, %v13
  %v21 = vadd.f32 %v18, 5.0
  %v22 = vmul.f32 %v21, %v10
  %v23 = vadd.f32 %v20, %v22
  %v24 = vrcp.pop %v17
  %v25 = vmul.f32 %v17, %v24
  %v26 = vsub.f32 2.0, %v25
  %v27 = vmul.f32 %v24, %v26
  %v28 = vmul.f32 %v23, %v27
  %v29 = vadd.f32 %v18, 9.0
  %v30 = vrcp.pop %v16
  %v31 = vmul.f32 %v16, %v30
  %v32 = vsub.f32 2.0, %v31
  %v33 = vmul.f32 %v30, %v32
  %v34 = vmul.f32 %v29, %v33
  %v35 = vadd.f32 %v28, %v34
  %v36 = vadd.f32 %v8, 6.0
  %v37 = vlog2.pop %v36
  %v38 = vmul.f32 %v37, 0.6931472
  %v39 = vrcp.pop %v36
  %v40 = vmul.f32 %v36, %v39
  %v41 = vsub.f32 2.0, %v40
  %v42 = vmul.f32 %v39, %v41
  %v43 = vmul.f32 %v42, %v42
  %v44 = vmul.f32 %v42, 0.5
  %v45 = vsub.f32 %v38, %v44
  %v46 = vmul.f32 %v43, 0.003968254
  %v47 = vsub.f32 0.008333334, %v46
  %v48 = vmul.f32 %v43, %v47
  %v49 = vsub.f32 0.083333336, %v48
  %v50 = vmul.f32 %v43, %v49
  %v51 = vsub.f32 %v45, %v50
  %v52 = vsub.f32 %v51, %v35
  %v53 = vlog2.pop %v17
  %v54 = vmul.f32 %v53, 0.6931472
  %v55 = vlog2.pop %v16
  %v56 = vmul.f32 %v55, 0.6931472
  %v57 = vadd.f32 %v54, %v56
  %v58 = vsub.f32 %v36, 0.5
  %v59 = vmul.f32 %v58, %v38
  %v60 = vsub.f32 %v59, %v36
  %v61 = vadd.f32 %v60, 0.9189385
  %v62 = vmul.f32 %v43, 0.0007936508
  %v63 = vsub.f32 0.0027777778, %v62
  %v64 = vmul.f32 %v43, %v63
  %v65 = vsub.f32 0.083333336, %v64
  %v66 = vmul.f32 %v42, %v65
  %v67 = vadd.f32 %v61, %v66
  %v68 = vsub.f32 %v67, %v57
  %v69 = vsub.f32 %v8, 1.0
  %v70 = vmul.f32 %v69, %v52
  %v71 = vlaneseq
  %v72 = vshrl.u32 %v71, 7
  %v73 = vlaneseq
  %v74 = vand.u32 %v73, 127
  %s75 = smul.u32 0, 8
  %v76 = vstv %s75
  %v77 = vadd.s32 %v76, %v72
  %v78 = vmul.u32 %v77, 128
  %v79 = vadd.s32 %v78, %v74
  %vm80 = vcmp.lt.s32.totalorder %v79, 32
  %v81 = vsel %vm80, %v68, 0.0
  %v82 = vsel %vm80, %v70, 0.0
  %83 = vst [vmem:[%s1] sm:$0xff] 0.0
  %v84 = vrot.slane %v81, 4
  %v85 = vadd.f32 %v81, %v84
  %v86 = vrot.slane %v85, 2
  %v87 = vadd.f32 %v85, %v86
  %v88 = vrot.slane %v87, 1
  %v89 = vadd.f32 %v87, %v88
  %90 = vst [vmem:[%s1] sm:$0x1] %v89
  %v91 = vrot.slane %v82, 4
  %v92 = vadd.f32 %v82, %v91
  %v93 = vrot.slane %v92, 2
  %v94 = vadd.f32 %v92, %v93
  %v95 = vrot.slane %v94, 1
  %v96 = vadd.f32 %v94, %v95
  %97 = vst [vmem:[%s1 + $0x1] sm:$0x1] %v96
  // Predicated region
  $region6: #{regularized_uce_loss.2} parent=0 // pred_check
    _
  $region7: #{regularized_uce_loss.2} parent=0 // pred_check_branch
    %99 = sbr.rel (0) target = $region9
  $region8: #{regularized_uce_loss.2} parent=0 // pred_region
    _
  $region9: #{regularized_uce_loss.2} parent=0 // pred_fallthru
    _
  // Predicated region
  $region10: #{regularized_uce_loss.2} parent=0 // pred_check
    _
  $region11: #{regularized_uce_loss.2} parent=0 // pred_check_branch
    %101 = sbr.rel (0) target = $region13
  $region12: #{regularized_uce_loss.2} parent=0 // pred_region
    _
  $region13: #{regularized_uce_loss.2} parent=0 // pred_fallthru
    _

</llo_original>
